<compile_context>
chip_gen: v6e
topology: v6e:2x2x1
jax: 0.10.0
libtpu: 0.0.40
codegen_flags: <defaults>
</compile_context>

<pallas_src>
import functools

import jax
import jax.numpy as jnp
from jax.experimental import pallas as pl
from jax.experimental.pallas import tpu as pltpu

_EPS = 1e-12            # torch.nn.functional.normalize default eps
_EPS_SQ = _EPS * _EPS   # clamp on squared norms: rsqrt(max(n2, eps^2)) == 1/max(||.||, eps)


def _round_up(x, m):
    return ((x + m - 1) // m) * m


def _group4_lane_sum(x):
    """Sum each aligned group of 4 lanes; the full group sum lands on lane 4k+3."""
    y = x + pltpu.roll(x, shift=2, axis=1)
    return y + pltpu.roll(y, shift=1, axis=1)


def _quat_loss_kernel(pred_ref, gt_ref, out_ref, *, rows_total, tile_rows,
                      has_overhang):
    # (tile_rows, 128) lane-dense block: 32 quaternions per row, 4 lanes each.
    p = pred_ref[...].astype(jnp.float32)
    g = gt_ref[...].astype(jnp.float32)

    pg = _group4_lane_sum(p * g)     # p.g        valid at lanes 4k+3
    pp = _group4_lane_sum(p * p)     # ||p||^2    valid at lanes 4k+3
    gg = _group4_lane_sum(g * g)     # ||g||^2    valid at lanes 4k+3

    inv_p = jax.lax.rsqrt(jnp.maximum(pp, _EPS_SQ))   # 1 / max(||p||, eps)
    inv_g = jax.lax.rsqrt(jnp.maximum(gg, _EPS_SQ))   # 1 / max(||g||, eps)
    dot = jnp.abs(pg) * inv_p * inv_g                 # |<p_hat, g_hat>|

    if has_overhang:
        # Only the trailing block overhangs the array; zero the unspecified
        # rows BEFORE the row reduction (they may contain NaN/Inf garbage).
        i = pl.program_id(0)
        row = jax.lax.broadcasted_iota(jnp.int32, dot.shape, 0) + i * tile_rows
        dot = jnp.where(row < rows_total, dot, 0.0)

    # Per-lane partial sum over this block's rows; lanes 4k+3 carry real data,
    # other lanes carry finite garbage that the wrapper epilogue masks out.
    out_ref[0] = jnp.sum(dot, axis=0, keepdims=True)  # (1, 128)


def quaternion_dot_product_loss(pred_quaternion, gt_quaternion, *,
                                target_block_bytes=2 * 1024 * 1024):
    """Pallas implementation of QuaternionDotProductLoss.forward.

    Args:
      pred_quaternion: (B, 4) array (w, x, y, z).
      gt_quaternion:   (B, 4) array (w, x, y, z).
      target_block_bytes: per-input VMEM block size (per pipeline buffer).
    Returns:
      scalar float32 loss.
    """
    assert pred_quaternion.shape == gt_quaternion.shape
    assert pred_quaternion.ndim == 2 and pred_quaternion.shape[1] == 4
    batch = pred_quaternion.shape[0]
    assert batch >= 1

    pred, gt = pred_quaternion, gt_quaternion

    # Zero-cost contiguous layout: (B, 4) -> (B*4/128, 128).  Only a ragged
    # batch (B % 32 != 0) pays a zero-pad; padded zero-quaternions contribute
    # exactly 0 to the dot-sum (|p.g| == 0, norms eps-clamped).
    b_pad = _round_up(batch, 32)
    if b_pad != batch:
        pad = b_pad - batch
        pred = jnp.pad(pred, ((0, pad), (0, 0)))
        gt = jnp.pad(gt, ((0, pad), (0, 0)))
    rows = b_pad // 32
    pred2d = pred.reshape(rows, 128)
    gt2d = gt.reshape(rows, 128)

    itemsize = jnp.dtype(pred2d.dtype).itemsize
    tile_rows = max(8, (target_block_bytes // (128 * itemsize)) // 8 * 8)
    if rows <= tile_rows:
        tile_rows = rows                    # single full block (always legal)
    num_tiles = pl.cdiv(rows, tile_rows)
    has_overhang = (num_tiles * tile_rows != rows)

    kernel = functools.partial(
        _quat_loss_kernel,
        rows_total=rows, tile_rows=tile_rows, has_overhang=has_overhang)

    partials = pl.pallas_call(
        kernel,
        out_shape=jax.ShapeDtypeStruct((num_tiles, 1, 128), jnp.float32),
        grid=(num_tiles,),
        in_specs=[
            pl.BlockSpec((tile_rows, 128), lambda i: (i, 0)),
            pl.BlockSpec((tile_rows, 128), lambda i: (i, 0)),
        ],
        out_specs=pl.BlockSpec((1, 1, 128), lambda i: (i, 0, 0)),
        compiler_params=pltpu.CompilerParams(
            # No carried state across steps -> fully parallel grid; on v7x this
            # lets both TensorCores each take part of the batch.
            dimension_semantics=("parallel",),
        ),
    )(pred2d, gt2d)

    # Tiny XLA epilogue: keep lanes holding the group-of-4 sums (lane % 4 == 3),
    # sum all partials, and finish mean(1 - dot) = 1 - sum(dot) / B.
    lane_mask = (jnp.arange(128) % 4) == 3
    dot_sum = jnp.sum(jnp.where(lane_mask, partials.reshape(num_tiles, 128), 0.0))
    return 1.0 - dot_sum / batch


def _reference(pred, gt, eps=_EPS):
    # Pure-JAX reference mirroring the PyTorch forward exactly.
    pred = pred.astype(jnp.float32)
    gt = gt.astype(jnp.float32)
    p_norm = jnp.maximum(jnp.linalg.norm(pred, axis=1, keepdims=True), eps)
    g_norm = jnp.maximum(jnp.linalg.norm(gt, axis=1, keepdims=True), eps)
    p = pred / p_norm
    g = gt / g_norm
    dot = jnp.abs(jnp.sum(p * g, axis=1))
    return jnp.mean(1.0 - dot)


if __name__ == "__main__":
    key = jax.random.PRNGKey(0)
    k1, k2 = jax.random.split(key)

    # Small shape consistent with the module: (batch=8, 4) quaternions.
    batch = 8
    pred_quaternion = jax.random.normal(k1, (batch, 4), dtype=jnp.float32)
    gt_quaternion = jax.random.normal(k2, (batch, 4), dtype=jnp.float32)

    loss = quaternion_dot_product_loss(pred_quaternion, gt_quaternion)
    loss = jax.block_until_ready(loss)
    ref = _reference(pred_quaternion, gt_quaternion)
    assert jnp.allclose(loss, ref, atol=1e-5, rtol=1e-5), (loss, ref)

    # Second check exercising the multi-tile grid + trailing-block overhang
    # path (batch = 33 * 32, tiny blocks force several grid steps).
    k3, k4 = jax.random.split(k2)
    batch2 = 1056
    pred2 = jax.random.normal(k3, (batch2, 4), dtype=jnp.float32)
    gt2 = jax.random.normal(k4, (batch2, 4), dtype=jnp.float32)
    loss2 = jax.block_until_ready(
        quaternion_dot_product_loss(pred2, gt2, target_block_bytes=4096))
    ref2 = _reference(pred2, gt2)
    assert jnp.allclose(loss2, ref2, atol=1e-5, rtol=1e-5), (loss2, ref2)

    print("KERNEL_OK")
</pallas_src>

<mosaic_0001>
module attributes {stable_mosaic.version = 11 : i64} {
  func.func @_quat_loss_kernel(%arg0: i32, %arg1: memref<1x128xf32, #tpu.memory_space<vmem>>, %arg2: memref<1x128xf32, #tpu.memory_space<vmem>>, %arg3: memref<1x1x128xf32, #tpu.memory_space<vmem>>) attributes {dimension_semantics = [#tpu.dimension_semantics<parallel>], iteration_bounds = array<i64: 1>, scalar_prefetch = 0 : i64, scratch_operands = 0 : i64, tpu.core_type = #tpu.core_type<tc>, window_params = [{transform_indices = @transform_0, window_bounds = array<i64: 1, 128>}, {transform_indices = @transform_1, window_bounds = array<i64: 1, 128>}, {transform_indices = @transform_2, window_bounds = array<i64: 1, 1, 128>}]} {
    %c0 = arith.constant 0 : index
    %c0_0 = arith.constant 0 : index
    %0 = vector.load %arg1[%c0, %c0_0] : memref<1x128xf32, #tpu.memory_space<vmem>>, vector<1x128xf32>
    %c0_1 = arith.constant 0 : index
    %c0_2 = arith.constant 0 : index
    %1 = vector.load %arg2[%c0_1, %c0_2] : memref<1x128xf32, #tpu.memory_space<vmem>>, vector<1x128xf32>
    %2 = arith.mulf %0, %1 : vector<1x128xf32>
    %c2_i32 = arith.constant 2 : i32
    %3 = tpu.dynamic_rotate %2 by %c2_i32 dim 1 : vector<1x128xf32>, i32 -> vector<1x128xf32>
    %4 = arith.addf %2, %3 : vector<1x128xf32>
    %c1_i32 = arith.constant 1 : i32
    %5 = tpu.dynamic_rotate %4 by %c1_i32 dim 1 : vector<1x128xf32>, i32 -> vector<1x128xf32>
    %6 = arith.addf %4, %5 : vector<1x128xf32>
    %7 = arith.mulf %0, %0 : vector<1x128xf32>
    %c2_i32_3 = arith.constant 2 : i32
    %8 = tpu.dynamic_rotate %7 by %c2_i32_3 dim 1 : vector<1x128xf32>, i32 -> vector<1x128xf32>
    %9 = arith.addf %7, %8 : vector<1x128xf32>
    %c1_i32_4 = arith.constant 1 : i32
    %10 = tpu.dynamic_rotate %9 by %c1_i32_4 dim 1 : vector<1x128xf32>, i32 -> vector<1x128xf32>
    %11 = arith.addf %9, %10 : vector<1x128xf32>
    %12 = arith.mulf %1, %1 : vector<1x128xf32>
    %c2_i32_5 = arith.constant 2 : i32
    %13 = tpu.dynamic_rotate %12 by %c2_i32_5 dim 1 : vector<1x128xf32>, i32 -> vector<1x128xf32>
    %14 = arith.addf %12, %13 : vector<1x128xf32>
    %c1_i32_6 = arith.constant 1 : i32
    %15 = tpu.dynamic_rotate %14 by %c1_i32_6 dim 1 : vector<1x128xf32>, i32 -> vector<1x128xf32>
    %16 = arith.addf %14, %15 : vector<1x128xf32>
    %cst = arith.constant 1.000000e-24 : f32
    %17 = vector.broadcast %cst : f32 to vector<1x128xf32>
    %18 = arith.maximumf %11, %17 : vector<1x128xf32>
    %19 = math.rsqrt %18 : vector<1x128xf32>
    %cst_7 = arith.constant 1.000000e-24 : f32
    %20 = vector.broadcast %cst_7 : f32 to vector<1x128xf32>
    %21 = arith.maximumf %16, %20 : vector<1x128xf32>
    %22 = math.rsqrt %21 : vector<1x128xf32>
    %23 = math.absf %6 : vector<1x128xf32>
    %24 = arith.mulf %23, %19 : vector<1x128xf32>
    %25 = arith.mulf %24, %22 : vector<1x128xf32>
    %cst_8 = arith.constant dense<0.000000e+00> : vector<128xf32>
    %26 = vector.multi_reduction <add>, %25, %cst_8 [0] : vector<1x128xf32> to vector<128xf32>
    %27 = vector.shape_cast %26 : vector<128xf32> to vector<1x128xf32>
    %c0_9 = arith.constant 0 : index
    %c0_10 = arith.constant 0 : index
    %c0_11 = arith.constant 0 : index
    %28 = vector.load %arg3[%c0_9, %c0_10, %c0_11] : memref<1x1x128xf32, #tpu.memory_space<vmem>>, vector<1x1x128xf32>
    %29 = vector.shape_cast %28 : vector<1x1x128xf32> to vector<1x128xf32>
    %30 = vector.shape_cast %27 : vector<1x128xf32> to vector<1x1x128xf32>
    tpu.vector_store %arg3[%c0_9, %c0_10, %c0_11], %30 {strides = array<i32>} : memref<1x1x128xf32, #tpu.memory_space<vmem>>, vector<1x1x128xf32>,
    return
  }
  func.func @transform_0(%arg0: i32) -> (i32, i32) {
    %c0_i32 = arith.constant 0 : i32
    %c0_i32_0 = arith.constant 0 : i32
    return %arg0, %c0_i32 : i32, i32
  }
  func.func @transform_1(%arg0: i32) -> (i32, i32) {
    %c0_i32 = arith.constant 0 : i32
    %c0_i32_0 = arith.constant 0 : i32
    return %arg0, %c0_i32 : i32, i32
  }
  func.func @transform_2(%arg0: i32) -> (i32, i32, i32) {
    %c0_i32 = arith.constant 0 : i32
    %c0_i32_0 = arith.constant 0 : i32
    %c0_i32_1 = arith.constant 0 : i32
    return %arg0, %c0_i32, %c0_i32_0 : i32, i32, i32
  }
}

</mosaic_0001>

<llo_original>
// kernel: tpu_custom_call.1
$region0: #{tpu_custom_call.1}
  #allocation0 [shape = 'u32[]', space=smem, size = 0x4, offset = 0x4, fixed_abs, tag = 'smem constant byte address 0x4 - core index']
  #allocation1 [shape = 'u32[144,128]{1,0:T(1,128)}', space=vmem, size = 0x12000, scoped, tag = 'internal scratch']
  %s0 = inlined_call_operand.hbm [shape: f32[1,128], index: 0, kind: input, shape index: {}]
  %s1 = inlined_call_operand.vmem [shape: f32[1,128], index: 1, kind: input, shape index: {}]
  %s2 = inlined_call_operand.hbm [shape: f32[1,1,128], index: 2, kind: output, shape index: {}]
  %s3 = sld [smem:[#allocation0]]
  $region22: #{tpu_custom_call.1} parent=0
    _
  %s5 = ssub.s32 1, %s3
  %s6 = scalar_select 0, %s5, %s3
  $region1: #{tpu_custom_call.1} parent=0
    #allocation2 [shape = 'u8[512]{0}', space=vmem, size = 0x400, scoped, tag = 'input window, operand 0, single buffered']
    #allocation3 [shape = 's32[1]{0}', space=sflag, size = 0x4, scoped, tag = 'scoped memory for tpu_custom_call.1']
    #allocation4 [shape = 's32[1]{0}', space=sflag, size = 0x4, scoped, tag = 'scoped memory for tpu_custom_call.1']
    #allocation5 [shape = 'u8[512]{0}', space=vmem, size = 0x400, scoped, tag = 'output window, operand 0, single buffered']
    %7 = vsyncpa [#allocation3], 0
    %8 = vsyncpa [#allocation4], 0
    // Predicated region
    $region2: #{tpu_custom_call.1} parent=1 // pred_check
      _
    $region3: #{tpu_custom_call.1} parent=1 // pred_check_branch
      %10 = sbr.rel (0) target = $region5
    $region4: #{tpu_custom_call.1} parent=1 // pred_region
      %s12 = ssub.s32 16, 16
      %13 = vsyncadd [#allocation3], %s12
      %s15 = sshll.u32 [#allocation2], 4
      %s16 = int_to_ptr.vmem [resolvable:$true] %s15
      %18 = dma.hbm_to_vmem [thread:$0]  %s0, 16, %s16, [#allocation3]
    $region5: #{tpu_custom_call.1} parent=1 // pred_fallthru
      _
    // Predicated region
    $region6: #{tpu_custom_call.1} parent=1 // pred_check
      _
    $region7: #{tpu_custom_call.1} parent=1 // pred_check_branch
      %20 = sbr.rel (0) target = $region9
    $region8: #{tpu_custom_call.1} parent=1 // pred_region
      _
    $region9: #{tpu_custom_call.1} parent=1 // pred_fallthru
      _
    // Predicated region
    $region10: #{tpu_custom_call.1} parent=1 // pred_check
      _
    $region11: #{tpu_custom_call.1} parent=1 // pred_check_branch
      %22 = sbr.rel (0) target = $region13
    $region12: #{tpu_custom_call.1} parent=1 // pred_region
      %23 = dma.done [#allocation3], 16
    $region13: #{tpu_custom_call.1} parent=1 // pred_fallthru
      _
    %v24 = vld [vmem:[#allocation2] sm:$0x1]
    %v25 = vld [vmem:[%s1] sm:$0x1]
    %v26 = vmul.f32 %v24, %v25
    %27 = vrot.lane.b32.xlu0 %v26, 2
    %v28 = vpop.permute.xlu0 %27
    %v29 = vadd.f32 %v26, %v28
    %30 = vrot.lane.b32.xlu0 %v29, 1
    %v31 = vpop.permute.xlu0 %30
    %v32 = vadd.f32 %v29, %v31
    %v33 = vmul.f32 %v24, %v24
    %34 = vrot.lane.b32.xlu0 %v33, 2
    %v35 = vpop.permute.xlu0 %34
    %v36 = vadd.f32 %v33, %v35
    %37 = vrot.lane.b32.xlu0 %v36, 1
    %v38 = vpop.permute.xlu0 %37
    %v39 = vadd.f32 %v36, %v38
    %v40 = vmul.f32 %v25, %v25
    %41 = vrot.lane.b32.xlu0 %v40, 2
    %v42 = vpop.permute.xlu0 %41
    %v43 = vadd.f32 %v40, %v42
    %44 = vrot.lane.b32.xlu0 %v43, 1
    %v45 = vpop.permute.xlu0 %44
    %v46 = vadd.f32 %v43, %v45
    %v47 = vmax.f32 %v39, 1e-24
    %v48 = vrsqrt.pop %v47
    %v49 = vmax.f32 %v46, 1e-24
    %v50 = vrsqrt.pop %v49
    %v51 = vand.u32 2147483647, %v32
    %v52 = vmul.f32 %v51, %v48
    %v53 = vmul.f32 %v52, %v50
    %v54 = vadd.f32 %v53, 0.0
    %55 = vst [vmem:[#allocation5] sm:$0x1] %v54
    // Predicated region
    $region14: #{tpu_custom_call.1} parent=1 // pred_check
      _
    $region15: #{tpu_custom_call.1} parent=1 // pred_check_branch
      %57 = sbr.rel (0) target = $region17
    $region16: #{tpu_custom_call.1} parent=1 // pred_region
      %s59 = ssub.s32 16, 16
      %60 = vsyncadd [#allocation4], %s59
      %s62 = sshll.u32 [#allocation5], 4
      %s63 = int_to_ptr.vmem [resolvable:$true] %s62
      %65 = dma.vmem_to_hbm [thread:$0]  %s63, 16, %s2, [#allocation4]
    $region17: #{tpu_custom_call.1} parent=1 // pred_fallthru
      _
    // Predicated region
    $region18: #{tpu_custom_call.1} parent=1 // pred_check
      _
    $region19: #{tpu_custom_call.1} parent=1 // pred_check_branch
      %67 = sbr.rel (0) target = $region21
    $region20: #{tpu_custom_call.1} parent=1 // pred_region
      %68 = dma.done [#allocation4], 16
    $region21: #{tpu_custom_call.1} parent=1 // pred_fallthru
      _
    %69 = vsyncpa [#allocation3], 1
    %70 = vsyncpa [#allocation4], 1

</llo_original>
